<compile_context>
chip_gen: v5e
topology: v5e:2x2
jax: 0.10.0
libtpu: 0.0.40
codegen_flags: <defaults>
</compile_context>

<pallas_src>
import functools

import jax
import jax.numpy as jnp
from jax.experimental import pallas as pl
from jax.experimental.pallas import tpu as pltpu


_NEG_SLOPE = 14.51776


def _mix_and_activate(x, w_ref, b_ref, negative_slope):
    """2x2 channel mix on a sublane-packed (rows, T) slab + fused leaky-where.

    Rows are interleaved [n0c0, n0c1, n1c0, n1c1, ...]: even rows are channel 0,
    odd rows channel 1 of the same batch element.  The cross-channel operand is
    obtained with an even/odd sublane pair-swap (XLU rolls, separate issue slot)
    and the weights/bias stay scalar (read from SMEM), so the whole mix is a
    handful of full-vreg VPU ops.
    """
    rows = x.shape[0]
    ridx = jax.lax.broadcasted_iota(jnp.int32, (rows, 1), 0)
    is_even = (ridx % 2) == 0

    w00 = w_ref[0, 0]
    w01 = w_ref[0, 1]
    w10 = w_ref[1, 0]
    w11 = w_ref[1, 1]
    c_same = jnp.where(is_even, w00, w11)              # (rows, 1)
    c_other = jnp.where(is_even, w01, w10)             # (rows, 1)
    c_bias = jnp.where(is_even, b_ref[0], b_ref[1])    # (rows, 1)

    # Pair swap: even row i picks row i+1, odd row i picks row i-1.
    up = pltpu.roll(x, shift=rows - 1, axis=0)         # row i <- row i+1 (mod rows)
    down = pltpu.roll(x, shift=1, axis=0)              # row i <- row i-1 (mod rows)
    partner = jnp.where(is_even, up, down)

    v = x * c_same + partner * c_other + c_bias
    return jnp.where(v > 0, v, v * negative_slope)


def _small_kernel(w_ref, b_ref, x_ref, o_ref, *, negative_slope, padding):
    """Whole (padded) length in one block: synthesize pad columns, mix, store."""
    rows = x_ref.shape[0]
    zcol = jnp.zeros((rows, padding), dtype=x_ref.dtype)
    xp = jnp.concatenate([zcol, x_ref[...], zcol], axis=1)   # (rows, L + 2p)
    o_ref[...] = _mix_and_activate(xp, w_ref, b_ref, negative_slope).astype(o_ref.dtype)


def _tiled_kernel(w_ref, b_ref, x_ref, halo_ref, o_ref, *,
                  negative_slope, seq_len, tile_l):
    """Length-tiled path (padding == 1), no cross-iteration state.

    Output column c uses input column c-1.  Within a tile that is a lane roll
    by 1; lane 0's source (input column i*T-1) comes from the dedicated halo
    block (last column of the previous 128-column block).  Columns whose source
    is outside [0, L) are zeroed, reproducing the zero-padded conv (the two pad
    columns become leaky(bias)).
    """
    i = pl.program_id(1)
    x = x_ref[...]                                            # (rows_blk, T)

    lane = jax.lax.broadcasted_iota(jnp.int32, (1, tile_l), 1)
    out_col = i * tile_l + lane
    in_valid = jnp.logical_and(out_col >= 1, out_col <= seq_len)

    xs = pltpu.roll(x, shift=1, axis=1)                       # col j <- col j-1
    halo_col = halo_ref[:, halo_ref.shape[1] - 1:]            # (rows_blk, 1)
    xs = jnp.where(lane == 0, halo_col, xs)
    xs = jnp.where(in_valid, xs, 0.0)

    o_ref[...] = _mix_and_activate(xs, w_ref, b_ref, negative_slope).astype(o_ref.dtype)


def _pick_row_block(total_rows, lane_width, budget_bytes=24 * 1024 * 1024):
    """Row-block size: full extent if it fits, else a multiple of 8 under budget."""
    per_row = lane_width * 4 * 2 * 2      # f32, (in + out), double-buffered
    cap = max(8, (budget_bytes // per_row) // 8 * 8)
    if total_rows <= cap:
        return int(total_rows)            # full extent (always even: 2 * N)
    return int(min(cap, 1024))            # multiple of 8 -> even, pair-aligned


def conv1d_k1_leaky(x, weight, bias, *, padding=1,
                    negative_slope=_NEG_SLOPE, lane_tile=65536):
    """leaky-where(Conv1d(2->2, kernel_size=1, padding=padding)(x)).

    x:      (N, 2, L)     float32
    weight: (2, 2, 1)     float32 (PyTorch Conv1d layout)
    bias:   (2,)          float32
    returns (N, 2, L + 2*padding)
    """
    N, Cin, L = x.shape
    Cout, Cin_w, K = weight.shape
    assert (Cin, Cin_w, K, Cout) == (2, 2, 1, 2), "specialized to Conv1d(2, 2, 1)"
    assert lane_tile % 128 == 0 and lane_tile > 0
    Lp = L + 2 * padding
    rows = N * Cin                         # == N * Cout

    x2d = x.reshape(rows, L)               # free view of the contiguous (N, C, L)
    w2d = weight.reshape(Cout, Cin).astype(jnp.float32)
    b1d = bias.reshape(Cout).astype(jnp.float32)

    itemsize = x.dtype.itemsize
    cost = pl.CostEstimate(
        flops=2 * N * Cout * Cin * Lp,
        transcendentals=0,
        bytes_accessed=x.size * itemsize + N * Cout * Lp * itemsize,
    )
    smem_spec = pl.BlockSpec(memory_space=pltpu.MemorySpace.SMEM)
    vmem_limit = 48 * 1024 * 1024          # fits v7x (64 MiB) with headroom

    if Lp <= lane_tile:
        # Full-extent length blocks; batch-block the rows to amortize per-step cost.
        rb = _pick_row_block(rows, Lp)
        kernel = functools.partial(_small_kernel,
                                   negative_slope=negative_slope,
                                   padding=padding)
        out2d = pl.pallas_call(
            kernel,
            out_shape=jax.ShapeDtypeStruct((rows, Lp), x.dtype),
            grid=(pl.cdiv(rows, rb),),
            in_specs=[
                smem_spec,                                   # weights (SMEM scalars)
                smem_spec,                                   # bias
                pl.BlockSpec((rb, L), lambda r: (r, 0)),
            ],
            out_specs=pl.BlockSpec((rb, Lp), lambda r: (r, 0)),
            compiler_params=pltpu.CompilerParams(
                dimension_semantics=("parallel",),
                vmem_limit_bytes=vmem_limit,
            ),
            cost_estimate=cost,
        )(w2d, b1d, x2d)
        return out2d.reshape(N, Cout, Lp)

    if padding != 1:
        # TODO(synk): general tiled path for padding > 1 (module only uses padding=1).
        raise NotImplementedError("length-tiled path is specialized to padding=1")

    tile_l = lane_tile
    rb = _pick_row_block(rows, tile_l)
    n_out_tiles = pl.cdiv(Lp, tile_l)
    n_in_blocks = pl.cdiv(L, tile_l)
    n_halo_blocks = pl.cdiv(L, 128)
    halo_per_tile = tile_l // 128

    def x_map(r, i):
        # Input tile i holds x columns [i*T, (i+1)*T); clamp for trailing
        # output tiles that only hold pad / out-of-range columns (masked).
        return (r, jnp.minimum(i, n_in_blocks - 1))

    def halo_map(r, i):
        # 128-wide block whose last column is input column i*T - 1 (the source
        # of output column i*T, i.e. lane 0 of output tile i).  Clamped for
        # i == 0 / trailing tiles where the halo value is masked anyway.
        blk = i * halo_per_tile - 1
        return (r, jnp.maximum(jnp.minimum(blk, n_halo_blocks - 1), 0))

    kernel = functools.partial(_tiled_kernel,
                               negative_slope=negative_slope,
                               seq_len=L, tile_l=tile_l)
    out2d = pl.pallas_call(
        kernel,
        out_shape=jax.ShapeDtypeStruct((rows, Lp), x.dtype),
        grid=(pl.cdiv(rows, rb), n_out_tiles),
        in_specs=[
            smem_spec,
            smem_spec,
            pl.BlockSpec((rb, tile_l), x_map),
            pl.BlockSpec((rb, 128), halo_map),
        ],
        out_specs=pl.BlockSpec((rb, tile_l), lambda r, i: (r, i)),
        compiler_params=pltpu.CompilerParams(
            dimension_semantics=("parallel", "parallel"),
            vmem_limit_bytes=vmem_limit,
        ),
        cost_estimate=cost,
    )(w2d, b1d, x2d, x2d)
    return out2d.reshape(N, Cout, Lp)


def _reference(x, weight, bias, *, padding=1, negative_slope=_NEG_SLOPE):
    """Pure-JAX reference mirroring the PyTorch module."""
    x_pad = jnp.pad(x, ((0, 0), (0, 0), (padding, padding)))
    v1 = jnp.einsum('oi,nil->nol', weight[:, :, 0], x_pad) + bias[None, :, None]
    return jnp.where(v1 > 0, v1, v1 * negative_slope)


if __name__ == "__main__":
    key = jax.random.PRNGKey(0)
    kx, kw, kb, kx2 = jax.random.split(key, 4)

    # Shapes implied by the module: Conv1d(2, 2, 1), batch=2, length=16.
    N, Cin, Cout, L = 2, 2, 2, 16
    x = jax.random.normal(kx, (N, Cin, L), dtype=jnp.float32)
    weight = jax.random.normal(kw, (Cout, Cin, 1), dtype=jnp.float32) * 0.5
    bias = jax.random.normal(kb, (Cout,), dtype=jnp.float32) * 0.1

    out = jax.block_until_ready(conv1d_k1_leaky(x, weight, bias))
    ref = _reference(x, weight, bias)
    assert out.shape == (N, Cout, L + 2)
    assert jnp.allclose(out, ref, atol=1e-5, rtol=1e-5), "small-path mismatch"

    # Also exercise the length-tiled multi-block path (force small lane tiles).
    L2 = 1536
    x2 = jax.random.normal(kx2, (N, Cin, L2), dtype=jnp.float32)
    out2 = jax.block_until_ready(conv1d_k1_leaky(x2, weight, bias, lane_tile=512))
    ref2 = _reference(x2, weight, bias)
    assert out2.shape == (N, Cout, L2 + 2)
    assert jnp.allclose(out2, ref2, atol=1e-5, rtol=1e-5), "tiled-path mismatch"

    print("KERNEL_OK")
</pallas_src>

<mosaic_0001>
module attributes {stable_mosaic.version = 11 : i64} {
  func.func @_small_kernel(%arg0: i32, %arg1: memref<2x2xf32, #tpu.memory_space<smem>>, %arg2: memref<2xf32, #tpu.memory_space<smem>>, %arg3: memref<4x16xf32, #tpu.memory_space<vmem>>, %arg4: memref<4x18xf32, #tpu.memory_space<vmem>>) attributes {dimension_semantics = [#tpu.dimension_semantics<parallel>], iteration_bounds = array<i64: 1>, scalar_prefetch = 0 : i64, scratch_operands = 0 : i64, tpu.core_type = #tpu.core_type<tc>, window_params = [{transform_indices = @transform_0, window_bounds = array<i64: 2, 2>}, {transform_indices = @transform_1, window_bounds = array<i64: 2>}, {transform_indices = @transform_2, window_bounds = array<i64: 4, 16>}, {transform_indices = @transform_3, window_bounds = array<i64: 4, 18>}]} {
    %cst = arith.constant 0.000000e+00 : f32
    %0 = vector.broadcast %cst : f32 to vector<4x1xf32>
    %c0 = arith.constant 0 : index
    %c0_0 = arith.constant 0 : index
    %1 = vector.load %arg3[%c0, %c0_0] : memref<4x16xf32, #tpu.memory_space<vmem>>, vector<4x16xf32>
    %2 = tpu.concatenate %0, %1, %0 in 1 : vector<4x1xf32>, vector<4x16xf32>, vector<4x1xf32> -> vector<4x18xf32>
    %3 = tpu.iota {dimensions = array<i32: 0>} : vector<4x1xi32>
    %c2_i32 = arith.constant 2 : i32
    %c0_i32 = arith.constant 0 : i32
    %4 = arith.cmpi eq, %c2_i32, %c0_i32 : i32
    %c1_i32 = arith.constant 1 : i32
    %5 = arith.select %4, %c1_i32, %c2_i32 : i32
    %6 = vector.broadcast %5 : i32 to vector<4x1xi32>
    %7 = arith.remsi %3, %6 : vector<4x1xi32>
    %c0_i32_1 = arith.constant 0 : i32
    %8 = vector.broadcast %c0_i32_1 : i32 to vector<4x1xi32>
    %9 = arith.cmpi ne, %7, %8 : vector<4x1xi32>
    %c0_i32_2 = arith.constant 0 : i32
    %10 = vector.broadcast %c0_i32_2 : i32 to vector<4x1xi32>
    %11 = arith.cmpi slt, %7, %10 : vector<4x1xi32>
    %c0_i32_3 = arith.constant 0 : i32
    %12 = arith.cmpi slt, %5, %c0_i32_3 : i32
    %13 = vector.broadcast %12 : i1 to vector<4x1xi1>
    %14 = vector.broadcast %13 : vector<4x1xi1> to vector<4x1xi1>
    %15 = arith.xori %11, %14 : vector<4x1xi1>
    %16 = arith.andi %15, %9 : vector<4x1xi1>
    %17 = vector.broadcast %5 : i32 to vector<4x1xi32>
    %18 = arith.addi %7, %17 : vector<4x1xi32>
    %19 = arith.select %16, %18, %7 : vector<4x1xi1>, vector<4x1xi32>
    %c0_i32_4 = arith.constant 0 : i32
    %20 = vector.broadcast %c0_i32_4 : i32 to vector<4x1xi32>
    %21 = arith.cmpi eq, %19, %20 : vector<4x1xi32>
    %c0_5 = arith.constant 0 : index
    %c0_6 = arith.constant 0 : index
    %22 = memref.load %arg1[%c0_5, %c0_6] : memref<2x2xf32, #tpu.memory_space<smem>>
    %c0_7 = arith.constant 0 : index
    %c1 = arith.constant 1 : index
    %23 = memref.load %arg1[%c0_7, %c1] : memref<2x2xf32, #tpu.memory_space<smem>>
    %c1_8 = arith.constant 1 : index
    %c0_9 = arith.constant 0 : index
    %24 = memref.load %arg1[%c1_8, %c0_9] : memref<2x2xf32, #tpu.memory_space<smem>>
    %c1_10 = arith.constant 1 : index
    %c1_11 = arith.constant 1 : index
    %25 = memref.load %arg1[%c1_10, %c1_11] : memref<2x2xf32, #tpu.memory_space<smem>>
    %26 = vector.broadcast %22 : f32 to vector<4x1xf32>
    %27 = vector.broadcast %25 : f32 to vector<4x1xf32>
    %28 = arith.select %21, %26, %27 : vector<4x1xi1>, vector<4x1xf32>
    %29 = vector.broadcast %23 : f32 to vector<4x1xf32>
    %30 = vector.broadcast %24 : f32 to vector<4x1xf32>
    %31 = arith.select %21, %29, %30 : vector<4x1xi1>, vector<4x1xf32>
    %c0_12 = arith.constant 0 : index
    %32 = memref.load %arg2[%c0_12] : memref<2xf32, #tpu.memory_space<smem>>
    %c1_13 = arith.constant 1 : index
    %33 = memref.load %arg2[%c1_13] : memref<2xf32, #tpu.memory_space<smem>>
    %34 = vector.broadcast %32 : f32 to vector<4x1xf32>
    %35 = vector.broadcast %33 : f32 to vector<4x1xf32>
    %36 = arith.select %21, %34, %35 : vector<4x1xi1>, vector<4x1xf32>
    %c3_i32 = arith.constant 3 : i32
    %37 = tpu.dynamic_rotate %2 by %c3_i32 dim 0 : vector<4x18xf32>, i32 -> vector<4x18xf32>
    %c1_i32_14 = arith.constant 1 : i32
    %38 = tpu.dynamic_rotate %2 by %c1_i32_14 dim 0 : vector<4x18xf32>, i32 -> vector<4x18xf32>
    %39 = vector.shape_cast %21 : vector<4x1xi1> to vector<4x1xi1>
    %40 = vector.broadcast %39 : vector<4x1xi1> to vector<4x18xi1>
    %41 = arith.select %40, %37, %38 : vector<4x18xi1>, vector<4x18xf32>
    %42 = vector.broadcast %28 : vector<4x1xf32> to vector<4x18xf32>
    %43 = arith.mulf %2, %42 : vector<4x18xf32>
    %44 = vector.broadcast %31 : vector<4x1xf32> to vector<4x18xf32>
    %45 = arith.mulf %41, %44 : vector<4x18xf32>
    %46 = arith.addf %43, %45 : vector<4x18xf32>
    %47 = vector.broadcast %36 : vector<4x1xf32> to vector<4x18xf32>
    %48 = arith.addf %46, %47 : vector<4x18xf32>
    %cst_15 = arith.constant 0.000000e+00 : f32
    %49 = vector.broadcast %cst_15 : f32 to vector<4x18xf32>
    %50 = arith.cmpf ogt, %48, %49 : vector<4x18xf32>
    %cst_16 = arith.constant 14.5177603 : f32
    %51 = vector.broadcast %cst_16 : f32 to vector<4x18xf32>
    %52 = arith.mulf %48, %51 : vector<4x18xf32>
    %53 = arith.select %50, %48, %52 : vector<4x18xi1>, vector<4x18xf32>
    %c0_17 = arith.constant 0 : index
    %c0_18 = arith.constant 0 : index
    %54 = vector.load %arg4[%c0_17, %c0_18] : memref<4x18xf32, #tpu.memory_space<vmem>>, vector<4x18xf32>
    tpu.vector_store %arg4[%c0_17, %c0_18], %53 {strides = array<i32>} : memref<4x18xf32, #tpu.memory_space<vmem>>, vector<4x18xf32>,
    return
  }
  func.func @transform_0(%arg0: i32) -> (i32, i32) {
    %c0_i32 = arith.constant 0 : i32
    %c0_i32_0 = arith.constant 0 : i32
    %c0_i32_1 = arith.constant 0 : i32
    return %c0_i32, %c0_i32_0 : i32, i32
  }
  func.func @transform_1(%arg0: i32) -> i32 {
    %c0_i32 = arith.constant 0 : i32
    %c0_i32_0 = arith.constant 0 : i32
    return %c0_i32 : i32
  }
  func.func @transform_2(%arg0: i32) -> (i32, i32) {
    %c0_i32 = arith.constant 0 : i32
    %c0_i32_0 = arith.constant 0 : i32
    return %arg0, %c0_i32 : i32, i32
  }
  func.func @transform_3(%arg0: i32) -> (i32, i32) {
    %c0_i32 = arith.constant 0 : i32
    %c0_i32_0 = arith.constant 0 : i32
    return %arg0, %c0_i32 : i32, i32
  }
}

</mosaic_0001>

<llo_original>
// kernel: tpu_custom_call.1
$region0: #{tpu_custom_call.1}
  #allocation0 [shape = 'u32[]', space=smem, size = 0x4, offset = 0x4, fixed_abs, tag = 'smem constant byte address 0x4 - core index']
  #allocation1 [shape = 'u32[72,128]{1,0:T(1,128)}', space=vmem, size = 0x9000, scoped, tag = 'internal scratch']
  %s0 = inlined_call_operand.hbm [shape: f32[2,2], index: 0, kind: input, shape index: {}]
  %s1 = inlined_call_operand.hbm [shape: f32[2], index: 1, kind: input, shape index: {}]
  %s2 = inlined_call_operand.hbm [shape: f32[4,16], index: 2, kind: input, shape index: {}]
  %s3 = inlined_call_operand.hbm [shape: f32[4,18], index: 3, kind: output, shape index: {}]
  %s4 = sld [smem:[#allocation0]]
  $region34: #{tpu_custom_call.1} parent=0
    _
  %s6 = ssub.s32 1, %s4
  %s7 = scalar_select 0, %s6, %s4
  $region1: #{tpu_custom_call.1} parent=0
    #allocation2 [shape = 'u8[1024]{0}', space=smem, size = 0x400, scoped, tag = 'input window, operand 0, single buffered']
    #allocation3 [shape = 's32[1]{0}', space=sflag, size = 0x4, scoped, tag = 'scoped memory for tpu_custom_call.1']
    #allocation4 [shape = 's32[1]{0}', space=sflag, size = 0x4, scoped, tag = 'scoped memory for tpu_custom_call.1']
    #allocation5 [shape = 's32[1]{0}', space=sflag, size = 0x4, scoped, tag = 'scoped memory for tpu_custom_call.1']
    #allocation6 [shape = 'u8[512]{0}', space=smem, size = 0x200, scoped, tag = 'input window, operand 1, single buffered']
    #allocation7 [shape = 's32[1]{0}', space=sflag, size = 0x4, scoped, tag = 'scoped memory for tpu_custom_call.1']
    #allocation8 [shape = 'u8[2048]{0}', space=vmem, size = 0x800, scoped, tag = 'input window, operand 2, single buffered']
    #allocation9 [shape = 'u8[2048]{0}', space=vmem, size = 0x800, scoped, tag = 'output window, operand 0, single buffered']
    %8 = vsyncpa [#allocation5], 0
    %9 = vsyncpa [#allocation7], 0
    %10 = vsyncpa [#allocation3], 0
    %11 = vsyncpa [#allocation4], 0
    // Predicated region
    $region2: #{tpu_custom_call.1} parent=1 // pred_check
      _
    $region3: #{tpu_custom_call.1} parent=1 // pred_check_branch
      %13 = sbr.rel (0) target = $region5
    $region4: #{tpu_custom_call.1} parent=1 // pred_region
      %15 = vsyncadd [#allocation5], 0
      %s17 = sshll.u32 %s0, 4
      %s18 = int_to_ptr.hbm [resolvable:$true] %s17
      %20 = dma.hbm_to_smem %s18, 32, [#allocation2], [#allocation5]
    $region5: #{tpu_custom_call.1} parent=1 // pred_fallthru
      _
    // Predicated region
    $region6: #{tpu_custom_call.1} parent=1 // pred_check
      _
    $region7: #{tpu_custom_call.1} parent=1 // pred_check_branch
      %22 = sbr.rel (0) target = $region9
    $region8: #{tpu_custom_call.1} parent=1 // pred_region
      %24 = vsyncadd [#allocation7], 0
      %s26 = sshll.u32 %s1, 4
      %s27 = int_to_ptr.hbm [resolvable:$true] %s26
      %29 = dma.hbm_to_smem %s27, 16, [#allocation6], [#allocation7]
    $region9: #{tpu_custom_call.1} parent=1 // pred_fallthru
      _
    // Predicated region
    $region10: #{tpu_custom_call.1} parent=1 // pred_check
      _
    $region11: #{tpu_custom_call.1} parent=1 // pred_check_branch
      %31 = sbr.rel (0) target = $region13
    $region12: #{tpu_custom_call.1} parent=1 // pred_region
      %33 = vsyncadd [#allocation3], 0
      %s35 = sshll.u32 %s2, 4
      %s36 = int_to_ptr.hbm [resolvable:$true] %s35
      %s37 = sshll.u32 [#allocation8], 4
      %s38 = int_to_ptr.vmem [resolvable:$true] %s37
      %40 = dma.hbm_to_vmem [thread:$0]  %s36, 64, %s38, [#allocation3]
    $region13: #{tpu_custom_call.1} parent=1 // pred_fallthru
      _
    // Predicated region
    $region14: #{tpu_custom_call.1} parent=1 // pred_check
      _
    $region15: #{tpu_custom_call.1} parent=1 // pred_check_branch
      %42 = sbr.rel (0) target = $region17
    $region16: #{tpu_custom_call.1} parent=1 // pred_region
      %44 = dma.done [#allocation5], 32
    $region17: #{tpu_custom_call.1} parent=1 // pred_fallthru
      _
    // Predicated region
    $region18: #{tpu_custom_call.1} parent=1 // pred_check
      _
    $region19: #{tpu_custom_call.1} parent=1 // pred_check_branch
      %46 = sbr.rel (0) target = $region21
    $region20: #{tpu_custom_call.1} parent=1 // pred_region
      %48 = dma.done [#allocation7], 16
    $region21: #{tpu_custom_call.1} parent=1 // pred_fallthru
      _
    // Predicated region
    $region22: #{tpu_custom_call.1} parent=1 // pred_check
      _
    $region23: #{tpu_custom_call.1} parent=1 // pred_check_branch
      %50 = sbr.rel (0) target = $region25
    $region24: #{tpu_custom_call.1} parent=1 // pred_region
      %52 = dma.done [#allocation3], 64
    $region25: #{tpu_custom_call.1} parent=1 // pred_fallthru
      _
    %53 = sfence
    %v54 = vld [vmem:[#allocation8] sm:$0xf]
    %56 = vrot.lane.b32.xlu0 %v54, 1
    %v57 = vpop.permute.xlu0 %56
    %vm59 = vcmask 7168
    %v60 = vsel %vm59, 0.0, %v57
    %vm61 = vcmask 138240
    %v62 = vsel %vm61, %v60, 0.0
    %v63 = vlaneseq
    %v64 = vshrl.u32 %v63, 7
    %vm65 = vcmp.lt.s32.totalorder %v64, 0
    %v66 = vsub.s32 0, %v64
    %v67 = vsel %vm65, %v66, %v64
    %v68 = vshrl.u32 %v67, 1
    %v69 = vand.u32 %v67, 1
    %v70 = vsub.s32 0, %v69
    %v71 = vsel %vm65, %v70, %v69
    %vm72 = vcmp.ne.s32.totalorder %v71, 0
    %vm73 = vcmp.lt.s32.totalorder %v71, 0
    %vm74 = vmand %vm73, %vm72
    %v75 = vadd.s32 %v71, 2
    %v76 = vsel %vm74, %v75, %v71
    %vm77 = vcmp.eq.s32.totalorder %v76, 0
    %s78 = sld [smem:[#allocation2]]
    %s79 = sld [smem:[#allocation2 + $0x1]]
    %s80 = sld [smem:[#allocation2 + $0x80]]
    %s81 = sld [smem:[#allocation2 + $0x81]]
    %v82 = vstv %s78
    %v83 = vstv %s81
    %v84 = vsel %vm77, %v82, %v83
    %v85 = vstv %s79
    %v86 = vstv %s80
    %v87 = vsel %vm77, %v85, %v86
    %s88 = sld [smem:[#allocation6]]
    %s89 = sld [smem:[#allocation6 + $0x1]]
    %v90 = vstv %s88
    %v91 = vstv %s89
    %v92 = vsel %vm77, %v90, %v91
    %vm93 = vcmask 1047556
    %v94 = vrot.slane %v62, 4
    %v95 = vsel %vm93, %v94, %v62
    %v96 = vrot.slane %v95, 4
    %v97 = vsel %vm93, %v96, %v62
    %v98 = vsel %vm77, 1, 0
    %vm99 = vcmp.eq.s32.totalorder %v98, 1
    %v101 = vrot.slane %v97, 1
    %v103 = vrot.slane %v97, 3
    %v105 = vsel %vm99, %v101, %v103
    %v106 = vmul.f32 %v62, %v84
    %v107 = vmul.f32 %v105, %v87
    %v108 = vadd.f32 %v106, %v107
    %v109 = vadd.f32 %v108, %v92
    %vm110 = vcmp.gt.f32.partialorder %v109, 0.0
    %v111 = vmul.f32 %v109, 14.51776
    %v112 = vsel %vm110, %v109, %v111
    %vm113 = vcmask 142336
    %114 = vst.msk [vmem:[#allocation9] sm:$0xf] %vm113, %v112
    // Predicated region
    $region26: #{tpu_custom_call.1} parent=1 // pred_check
      _
    $region27: #{tpu_custom_call.1} parent=1 // pred_check_branch
      %116 = sbr.rel (0) target = $region29
    $region28: #{tpu_custom_call.1} parent=1 // pred_region
      %118 = vsyncadd [#allocation4], 0
      %s120 = sshll.u32 [#allocation9], 4
      %s121 = int_to_ptr.vmem [resolvable:$true] %s120
      %s122 = sshll.u32 %s3, 4
      %s123 = int_to_ptr.hbm [resolvable:$true] %s122
      %125 = dma.vmem_to_hbm [thread:$0]  %s121, 64, %s123, [#allocation4]
    $region29: #{tpu_custom_call.1} parent=1 // pred_fallthru
      _
    // Predicated region
    $region30: #{tpu_custom_call.1} parent=1 // pred_check
      _
    $region31: #{tpu_custom_call.1} parent=1 // pred_check_branch
      %127 = sbr.rel (0) target = $region33
    $region32: #{tpu_custom_call.1} parent=1 // pred_region
      %129 = dma.done [#allocation4], 64
    $region33: #{tpu_custom_call.1} parent=1 // pred_fallthru
      _
    %130 = vsyncpa [#allocation3], 1
    %131 = vsyncpa [#allocation4], 1
    %132 = vsyncpa [#allocation5], 1
    %133 = vsyncpa [#allocation7], 1

</llo_original>
